<compile_context>
chip_gen: v5e
topology: v5e:2x2
jax: 0.10.0
libtpu: 0.0.40
codegen_flags: <defaults>
</compile_context>

<pallas_src>
import functools

import jax
import jax.numpy as jnp
from jax.experimental import pallas as pl
from jax.experimental.pallas import tpu as pltpu


def _round_up(a: int, m: int) -> int:
    return (a + m - 1) // m * m


def mlp_kernel(x_ref, w1_ref, b1_ref, w2_ref, b2_ref, o_ref, acc_ref):
    k = pl.program_id(1)

    @pl.when(k == 0)
    def _init():
        acc_ref[...] = jnp.zeros_like(acc_ref)

    # fc1 partial: (tm, tk) bf16 @ (tk, H) bf16 -> f32 accumulate on MXU.
    acc_ref[...] += jnp.dot(
        x_ref[...], w1_ref[...], preferred_element_type=jnp.float32
    )

    @pl.when(k == pl.num_programs(1) - 1)
    def _epilogue():
        # fc1 bias + ReLU (VPU), then fc3 + bias + sigmoid (MXU + EUP).
        h = jnp.maximum(acc_ref[...] + b1_ref[...], 0.0)
        z = jnp.dot(
            h.astype(jnp.bfloat16), w2_ref[...],
            preferred_element_type=jnp.float32,
        ) + b2_ref[...]
        o_ref[...] = jax.nn.sigmoid(z).astype(o_ref.dtype)


@functools.partial(jax.jit, static_argnames=("tm", "tk"))
def my_network_forward(x, w1, b1, w2, b2, *, tm=128, tk=512):
    """x: (B, vocab); w1: (vocab, hidden1); b1: (hidden1,) or (1, hidden1);
       w2: (hidden1, num_labels); b2: (num_labels,) or (1, num_labels)
       -> (B, num_labels) float32."""
    B, K = x.shape
    H = w1.shape[1]
    N = w2.shape[1]

    b1 = jnp.reshape(b1, (1, -1))
    b2 = jnp.reshape(b2, (1, -1))

    # Padded / tiled sizes: M to MXU height, lane dims to 128, K to the K tile.
    tk = min(tk, _round_up(K, 128))
    M_pad = _round_up(B, tm)
    K_pad = _round_up(K, tk)
    H_pad = _round_up(H, 128)
    N_pad = _round_up(N, 128)

    # bf16 storage for MXU operands (halves HBM->VMEM traffic, 2x MXU throughput);
    # zero padding is exact for the reduction and for the unused hidden/label lanes.
    xp = jnp.zeros((M_pad, K_pad), jnp.bfloat16).at[:B, :K].set(
        x.astype(jnp.bfloat16))
    w1p = jnp.zeros((K_pad, H_pad), jnp.bfloat16).at[:K, :H].set(
        w1.astype(jnp.bfloat16))
    b1p = jnp.zeros((1, H_pad), jnp.float32).at[:, :H].set(
        b1.astype(jnp.float32))
    w2p = jnp.zeros((H_pad, N_pad), jnp.bfloat16).at[:H, :N].set(
        w2.astype(jnp.bfloat16))
    b2p = jnp.zeros((1, N_pad), jnp.float32).at[:, :N].set(
        b2.astype(jnp.float32))

    grid = (M_pad // tm, K_pad // tk)

    cost = pl.CostEstimate(
        flops=2 * M_pad * K_pad * H_pad + 2 * M_pad * H_pad * N_pad,
        transcendentals=M_pad * N_pad,
        bytes_accessed=(xp.size * 2 + w1p.size * 2 + w2p.size * 2
                        + b1p.size * 4 + b2p.size * 4 + M_pad * N_pad * 4),
    )

    out_padded = pl.pallas_call(
        mlp_kernel,
        out_shape=jax.ShapeDtypeStruct((M_pad, N_pad), jnp.float32),
        grid_spec=pltpu.PrefetchScalarGridSpec(
            num_scalar_prefetch=0,
            grid=grid,
            in_specs=[
                pl.BlockSpec((tm, tk), lambda i, k: (i, k)),      # x tile
                pl.BlockSpec((tk, H_pad), lambda i, k: (k, 0)),   # W1 tile
                pl.BlockSpec((1, H_pad), lambda i, k: (0, 0)),    # b1 (resident)
                pl.BlockSpec((H_pad, N_pad), lambda i, k: (0, 0)),  # W2 (resident)
                pl.BlockSpec((1, N_pad), lambda i, k: (0, 0)),    # b2 (resident)
            ],
            out_specs=pl.BlockSpec((tm, N_pad), lambda i, k: (i, 0)),
            scratch_shapes=[pltpu.VMEM((tm, H_pad), jnp.float32)],
        ),
        compiler_params=pltpu.CompilerParams(
            dimension_semantics=("parallel", "arbitrary"),
            vmem_limit_bytes=32 * 1024 * 1024,
        ),
        cost_estimate=cost,
    )(xp, w1p, b1p, w2p, b2p)

    return out_padded[:B, :N]


if __name__ == "__main__":
    # Small shapes consistent with the module's forward: x is (batch, vocab_size).
    batch_size = 8
    vocab_size = 256
    hidden1 = 128
    num_labels = 16

    key = jax.random.PRNGKey(0)
    kx, kw1, kb1, kw2, kb2 = jax.random.split(key, 5)

    # Deterministic parameter init (PyTorch nn.Linear-style uniform bounds).
    x = jax.random.normal(kx, (batch_size, vocab_size), dtype=jnp.float32)
    bound1 = 1.0 / (vocab_size ** 0.5)
    w1 = jax.random.uniform(kw1, (vocab_size, hidden1), jnp.float32, -bound1, bound1)
    b1 = jax.random.uniform(kb1, (1, hidden1), jnp.float32, -bound1, bound1)
    bound2 = 1.0 / (hidden1 ** 0.5)
    w2 = jax.random.uniform(kw2, (hidden1, num_labels), jnp.float32, -bound2, bound2)
    b2 = jax.random.uniform(kb2, (1, num_labels), jnp.float32, -bound2, bound2)

    out = my_network_forward(x, w1, b1, w2, b2)
    jax.block_until_ready(out)

    # Reference check in plain JAX f32 (same math as the PyTorch forward).
    # Tolerance is loosened because the kernel feeds bf16 operands to the MXU
    # (f32 accumulation), per the performance review.
    ref = jax.nn.sigmoid(jnp.maximum(x @ w1 + b1, 0.0) @ w2 + b2)
    assert out.shape == (batch_size, num_labels)
    assert jnp.allclose(out, ref, atol=2e-2, rtol=2e-2), (
        float(jnp.max(jnp.abs(out - ref))))

    print("KERNEL_OK")
</pallas_src>

<mosaic_0001>
module attributes {stable_mosaic.version = 11 : i64} {
  func.func @mlp_kernel(%arg0: i32, %arg1: i32, %arg2: memref<128x256xbf16, #tpu.memory_space<vmem>>, %arg3: memref<256x128xbf16, #tpu.memory_space<vmem>>, %arg4: memref<1x128xf32, #tpu.memory_space<vmem>>, %arg5: memref<128x128xbf16, #tpu.memory_space<vmem>>, %arg6: memref<1x128xf32, #tpu.memory_space<vmem>>, %arg7: memref<128x128xf32, #tpu.memory_space<vmem>>, %arg8: memref<128x128xf32, #tpu.memory_space<vmem>>) attributes {dimension_semantics = [#tpu.dimension_semantics<parallel>, #tpu.dimension_semantics<arbitrary>], iteration_bounds = array<i64: 1, 1>, scalar_prefetch = 0 : i64, scratch_operands = 1 : i64, tpu.core_type = #tpu.core_type<tc>, window_params = [{transform_indices = @transform_0, window_bounds = array<i64: 128, 256>}, {transform_indices = @transform_1, window_bounds = array<i64: 256, 128>}, {pipeline_mode = #tpu.pipeline_mode<synchronous>, transform_indices = @transform_2, window_bounds = array<i64: 1, 128>}, {pipeline_mode = #tpu.pipeline_mode<synchronous>, transform_indices = @transform_3, window_bounds = array<i64: 128, 128>}, {pipeline_mode = #tpu.pipeline_mode<synchronous>, transform_indices = @transform_4, window_bounds = array<i64: 1, 128>}, {transform_indices = @transform_5, window_bounds = array<i64: 128, 128>}]} {
    %c0_i32 = arith.constant 0 : i32
    %0 = arith.cmpi eq, %arg1, %c0_i32 : i32
    %1 = arith.extui %0 : i1 to i32
    %c0_i32_0 = arith.constant 0 : i32
    %2 = arith.cmpi ne, %1, %c0_i32_0 : i32
    scf.if %2 {
      %cst_10 = arith.constant 0.000000e+00 : f32
      %12 = vector.broadcast %cst_10 : f32 to vector<128x128xf32>
      %c0_11 = arith.constant 0 : index
      %c0_12 = arith.constant 0 : index
      %13 = vector.load %arg8[%c0_11, %c0_12] : memref<128x128xf32, #tpu.memory_space<vmem>>, vector<128x128xf32>
      tpu.vector_store %arg8[%c0_11, %c0_12], %12 {strides = array<i32>} : memref<128x128xf32, #tpu.memory_space<vmem>>, vector<128x128xf32>,
    } else {
    }
    %c0 = arith.constant 0 : index
    %c0_1 = arith.constant 0 : index
    %3 = vector.load %arg8[%c0, %c0_1] : memref<128x128xf32, #tpu.memory_space<vmem>>, vector<128x128xf32>
    %c0_2 = arith.constant 0 : index
    %c0_3 = arith.constant 0 : index
    %4 = vector.load %arg2[%c0_2, %c0_3] : memref<128x256xbf16, #tpu.memory_space<vmem>>, vector<128x256xbf16>
    %c0_4 = arith.constant 0 : index
    %c0_5 = arith.constant 0 : index
    %5 = vector.load %arg3[%c0_4, %c0_5] : memref<256x128xbf16, #tpu.memory_space<vmem>>, vector<256x128xbf16>
    %cst = arith.constant dense<0.000000e+00> : vector<128x128xf32>
    %6 = tpu.matmul %4, %5, %cst {dimension_numbers = #tpu.dot_dimension_numbers<[1], [0], [0], [1], [0, 0, 1, 1], [], []>} : vector<128x256xbf16>, vector<256x128xbf16>, vector<128x128xf32> -> vector<128x128xf32>
    %7 = arith.addf %3, %6 : vector<128x128xf32>
    %c0_6 = arith.constant 0 : index
    %c0_7 = arith.constant 0 : index
    %8 = vector.load %arg8[%c0_6, %c0_7] : memref<128x128xf32, #tpu.memory_space<vmem>>, vector<128x128xf32>
    tpu.vector_store %arg8[%c0_6, %c0_7], %7 {strides = array<i32>} : memref<128x128xf32, #tpu.memory_space<vmem>>, vector<128x128xf32>,
    %c0_i32_8 = arith.constant 0 : i32
    %9 = arith.cmpi eq, %arg1, %c0_i32_8 : i32
    %10 = arith.extui %9 : i1 to i32
    %c0_i32_9 = arith.constant 0 : i32
    %11 = arith.cmpi ne, %10, %c0_i32_9 : i32
    scf.if %11 {
      %c0_10 = arith.constant 0 : index
      %c0_11 = arith.constant 0 : index
      %12 = vector.load %arg8[%c0_10, %c0_11] : memref<128x128xf32, #tpu.memory_space<vmem>>, vector<128x128xf32>
      %c0_12 = arith.constant 0 : index
      %c0_13 = arith.constant 0 : index
      %13 = vector.load %arg4[%c0_12, %c0_13] : memref<1x128xf32, #tpu.memory_space<vmem>>, vector<1x128xf32>
      %14 = vector.broadcast %13 : vector<1x128xf32> to vector<128x128xf32>
      %15 = arith.addf %12, %14 : vector<128x128xf32>
      %cst_14 = arith.constant 0.000000e+00 : f32
      %16 = vector.broadcast %cst_14 : f32 to vector<128x128xf32>
      %17 = arith.maximumf %15, %16 : vector<128x128xf32>
      %18 = arith.truncf %17 : vector<128x128xf32> to vector<128x128xbf16>
      %c0_15 = arith.constant 0 : index
      %c0_16 = arith.constant 0 : index
      %19 = vector.load %arg5[%c0_15, %c0_16] : memref<128x128xbf16, #tpu.memory_space<vmem>>, vector<128x128xbf16>
      %cst_17 = arith.constant dense<0.000000e+00> : vector<128x128xf32>
      %20 = tpu.matmul %18, %19, %cst_17 {dimension_numbers = #tpu.dot_dimension_numbers<[1], [0], [0], [1], [0, 0, 1, 1], [], []>} : vector<128x128xbf16>, vector<128x128xbf16>, vector<128x128xf32> -> vector<128x128xf32>
      %c0_18 = arith.constant 0 : index
      %c0_19 = arith.constant 0 : index
      %21 = vector.load %arg6[%c0_18, %c0_19] : memref<1x128xf32, #tpu.memory_space<vmem>>, vector<1x128xf32>
      %22 = vector.broadcast %21 : vector<1x128xf32> to vector<128x128xf32>
      %23 = arith.addf %20, %22 : vector<128x128xf32>
      %24 = arith.negf %23 : vector<128x128xf32>
      %25 = math.exp %24 : vector<128x128xf32>
      %cst_20 = arith.constant 1.000000e+00 : f32
      %26 = vector.broadcast %cst_20 : f32 to vector<128x128xf32>
      %27 = arith.addf %26, %25 : vector<128x128xf32>
      %28 = arith.divf %26, %27 : vector<128x128xf32>
      %c0_21 = arith.constant 0 : index
      %c0_22 = arith.constant 0 : index
      %29 = vector.load %arg7[%c0_21, %c0_22] : memref<128x128xf32, #tpu.memory_space<vmem>>, vector<128x128xf32>
      tpu.vector_store %arg7[%c0_21, %c0_22], %28 {strides = array<i32>} : memref<128x128xf32, #tpu.memory_space<vmem>>, vector<128x128xf32>,
    } else {
    }
    return
  }
  func.func @transform_0(%arg0: i32, %arg1: i32) -> (i32, i32) {
    %c0_i32 = arith.constant 0 : i32
    return %arg0, %arg1 : i32, i32
  }
  func.func @transform_1(%arg0: i32, %arg1: i32) -> (i32, i32) {
    %c0_i32 = arith.constant 0 : i32
    %c0_i32_0 = arith.constant 0 : i32
    return %arg1, %c0_i32 : i32, i32
  }
  func.func @transform_2(%arg0: i32, %arg1: i32) -> (i32, i32) {
    %c0_i32 = arith.constant 0 : i32
    %c0_i32_0 = arith.constant 0 : i32
    %c0_i32_1 = arith.constant 0 : i32
    return %c0_i32, %c0_i32_0 : i32, i32
  }
  func.func @transform_3(%arg0: i32, %arg1: i32) -> (i32, i32) {
    %c0_i32 = arith.constant 0 : i32
    %c0_i32_0 = arith.constant 0 : i32
    %c0_i32_1 = arith.constant 0 : i32
    return %c0_i32, %c0_i32_0 : i32, i32
  }
  func.func @transform_4(%arg0: i32, %arg1: i32) -> (i32, i32) {
    %c0_i32 = arith.constant 0 : i32
    %c0_i32_0 = arith.constant 0 : i32
    %c0_i32_1 = arith.constant 0 : i32
    return %c0_i32, %c0_i32_0 : i32, i32
  }
  func.func @transform_5(%arg0: i32, %arg1: i32) -> (i32, i32) {
    %c0_i32 = arith.constant 0 : i32
    %c0_i32_0 = arith.constant 0 : i32
    return %arg0, %c0_i32 : i32, i32
  }
}

</mosaic_0001>

<llo_original>
// kernel: my_network_forward.1
$region0: #{my_network_forward.1}
  #allocation0 [shape = 'u32[]', space=smem, size = 0x4, offset = 0x4, fixed_abs, tag = 'smem constant byte address 0x4 - core index']
  #allocation1 [shape = 'u32[72,128]{1,0:T(1,128)}', space=vmem, size = 0x9000, scoped, tag = 'internal scratch']
  #allocation2 [shape = 'f32[128,128]{1,0:T(8,128)}', space=vmem, size = 0x10000, scoped, tag = 'scratch operand']
  %s0 = inlined_call_operand.vmem [shape: bf16[128,256], index: 0, kind: input, shape index: {}]
  %s1 = inlined_call_operand.vmem [shape: bf16[256,128], index: 1, kind: input, shape index: {}]
  %s2 = inlined_call_operand.vmem [shape: f32[1,128], index: 2, kind: input, shape index: {}]
  %s3 = inlined_call_operand.vmem [shape: bf16[128,128], index: 3, kind: input, shape index: {}]
  %s4 = inlined_call_operand.vmem [shape: f32[1,128], index: 4, kind: input, shape index: {}]
  %s5 = inlined_call_operand.vmem [shape: f32[128,128], index: 5, kind: output, shape index: {}]
  %s6 = sld [smem:[#allocation0]]
  $region38: #{my_network_forward.1} parent=0
    _
  %s8 = ssub.s32 1, %s6
  %s9 = scalar_select 0, %s8, %s6
  // Predicated region
  $region2: #{my_network_forward.1} parent=0 // pred_check
    _
  $region3: #{my_network_forward.1} parent=0 // pred_check_branch
    %11 = sbr.rel (0) target = $region5
  $region4: #{my_network_forward.1} parent=0 // pred_region
    _
  $region5: #{my_network_forward.1} parent=0 // pred_fallthru
    _
  // Predicated region
  $region6: #{my_network_forward.1} parent=0 // pred_check
    _
  $region7: #{my_network_forward.1} parent=0 // pred_check_branch
    %13 = sbr.rel (0) target = $region9
  $region8: #{my_network_forward.1} parent=0 // pred_region
    _
  $region9: #{my_network_forward.1} parent=0 // pred_fallthru
    _
  // Predicated region
  $region10: #{my_network_forward.1} parent=0 // pred_check
    _
  $region11: #{my_network_forward.1} parent=0 // pred_check_branch
    %15 = sbr.rel (0) target = $region13
  $region12: #{my_network_forward.1} parent=0 // pred_region
    _
  $region13: #{my_network_forward.1} parent=0 // pred_fallthru
    _
  // Predicated region
  $region14: #{my_network_forward.1} parent=0 // pred_check
    _
  $region15: #{my_network_forward.1} parent=0 // pred_check_branch
    %17 = sbr.rel (0) target = $region17
  $region16: #{my_network_forward.1} parent=0 // pred_region
    _
  $region17: #{my_network_forward.1} parent=0 // pred_fallthru
    _
  // Predicated region
  $region18: #{my_network_forward.1} parent=0 // pred_check
    _
  $region19: #{my_network_forward.1} parent=0 // pred_check_branch
    %19 = sbr.rel (0) target = $region21
  $region20: #{my_network_forward.1} parent=0 // pred_region
    _
  $region21: #{my_network_forward.1} parent=0 // pred_fallthru
    _
  %p20 = scmp.eq.s32.totalorder 0, 0
  // Predicated region
  $region22: #{my_network_forward.1} parent=0 // pred_check
    %p21 = pneg %p20
  $region23: #{my_network_forward.1} parent=0 // pred_check_branch
    %23 = sbr.rel (%p21) target = $region25
  $region24: #{my_network_forward.1} parent=0 // pred_region
    %24 = vst [vmem:[#allocation2] sm:$0xff] 0.0
    %25 = vst [vmem:[#allocation2 + $0x8] sm:$0xff] 0.0
    %26 = vst [vmem:[#allocation2 + $0x10] sm:$0xff] 0.0
    %27 = vst [vmem:[#allocation2 + $0x18] sm:$0xff] 0.0
    %28 = vst [vmem:[#allocation2 + $0x20] sm:$0xff] 0.0
    %29 = vst [vmem:[#allocation2 + $0x28] sm:$0xff] 0.0
    %30 = vst [vmem:[#allocation2 + $0x30] sm:$0xff] 0.0
    %31 = vst [vmem:[#allocation2 + $0x38] sm:$0xff] 0.0
    %32 = vst [vmem:[#allocation2 + $0x40] sm:$0xff] 0.0
    %33 = vst [vmem:[#allocation2 + $0x48] sm:$0xff] 0.0
    %34 = vst [vmem:[#allocation2 + $0x50] sm:$0xff] 0.0
    %35 = vst [vmem:[#allocation2 + $0x58] sm:$0xff] 0.0
    %36 = vst [vmem:[#allocation2 + $0x60] sm:$0xff] 0.0
    %37 = vst [vmem:[#allocation2 + $0x68] sm:$0xff] 0.0
    %38 = vst [vmem:[#allocation2 + $0x70] sm:$0xff] 0.0
    %39 = vst [vmem:[#allocation2 + $0x78] sm:$0xff] 0.0
  $region25: #{my_network_forward.1} parent=0 // pred_fallthru
    _
  %v40 = vld [vmem:[#allocation2] sm:$0xff]
  %v41 = vld [vmem:[#allocation2 + $0x8] sm:$0xff]
  %v42 = vld [vmem:[#allocation2 + $0x10] sm:$0xff]
  %v43 = vld [vmem:[#allocation2 + $0x18] sm:$0xff]
  %v44 = vld [vmem:[#allocation2 + $0x20] sm:$0xff]
  %v45 = vld [vmem:[#allocation2 + $0x28] sm:$0xff]
  %v46 = vld [vmem:[#allocation2 + $0x30] sm:$0xff]
  %v47 = vld [vmem:[#allocation2 + $0x38] sm:$0xff]
  %v48 = vld [vmem:[#allocation2 + $0x40] sm:$0xff]
  %v49 = vld [vmem:[#allocation2 + $0x48] sm:$0xff]
  %v50 = vld [vmem:[#allocation2 + $0x50] sm:$0xff]
  %v51 = vld [vmem:[#allocation2 + $0x58] sm:$0xff]
  %v52 = vld [vmem:[#allocation2 + $0x60] sm:$0xff]
  %v53 = vld [vmem:[#allocation2 + $0x68] sm:$0xff]
  %v54 = vld [vmem:[#allocation2 + $0x70] sm:$0xff]
  %v55 = vld [vmem:[#allocation2 + $0x78] sm:$0xff]
  %v56 = vld [vmem:[%s0] sm:$0xff]
  %v57 = vld [vmem:[%s0 + $0x8] sm:$0xff]
  %v58 = vld [vmem:[%s0 + $0x10] sm:$0xff]
  %v59 = vld [vmem:[%s0 + $0x18] sm:$0xff]
  %v60 = vld [vmem:[%s0 + $0x20] sm:$0xff]
  %v61 = vld [vmem:[%s0 + $0x28] sm:$0xff]
  %v62 = vld [vmem:[%s0 + $0x30] sm:$0xff]
  %v63 = vld [vmem:[%s0 + $0x38] sm:$0xff]
  %v64 = vld [vmem:[%s0 + $0x40] sm:$0xff]
  %v65 = vld [vmem:[%s0 + $0x48] sm:$0xff]
  %v66 = vld [vmem:[%s0 + $0x50] sm:$0xff]
  %v67 = vld [vmem:[%s0 + $0x58] sm:$0xff]
  %v68 = vld [vmem:[%s0 + $0x60] sm:$0xff]
  %v69 = vld [vmem:[%s0 + $0x68] sm:$0xff]
  %v70 = vld [vmem:[%s0 + $0x70] sm:$0xff]
  %v71 = vld [vmem:[%s0 + $0x78] sm:$0xff]
  %v72 = vld [vmem:[%s1] sm:$0xf]
  %v73 = vld [vmem:[%s1 + $0x4] sm:$0xf]
  %v74 = vld [vmem:[%s1 + $0x8] sm:$0xf]
  %v75 = vld [vmem:[%s1 + $0xc] sm:$0xf]
  %v76 = vld [vmem:[%s1 + $0x10] sm:$0xf]
  %v77 = vld [vmem:[%s1 + $0x14] sm:$0xf]
  %v78 = vld [vmem:[%s1 + $0x18] sm:$0xf]
  %v79 = vld [vmem:[%s1 + $0x1c] sm:$0xf]
  %v80 = vld [vmem:[%s1 + $0x20] sm:$0xf]
  %v81 = vld [vmem:[%s1 + $0x24] sm:$0xf]
  %v82 = vld [vmem:[%s1 + $0x28] sm:$0xf]
  %v83 = vld [vmem:[%s1 + $0x2c] sm:$0xf]
  %v84 = vld [vmem:[%s1 + $0x30] sm:$0xf]
  %v85 = vld [vmem:[%s1 + $0x34] sm:$0xf]
  %v86 = vld [vmem:[%s1 + $0x38] sm:$0xf]
  %v87 = vld [vmem:[%s1 + $0x3c] sm:$0xf]
  %v88 = vld [vmem:[%s1 + $0x40] sm:$0xf]
  %v89 = vld [vmem:[%s1 + $0x44] sm:$0xf]
  %v90 = vld [vmem:[%s1 + $0x48] sm:$0xf]
  %v91 = vld [vmem:[%s1 + $0x4c] sm:$0xf]
  %v92 = vld [vmem:[%s1 + $0x50] sm:$0xf]
  %v93 = vld [vmem:[%s1 + $0x54] sm:$0xf]
  %v94 = vld [vmem:[%s1 + $0x58] sm:$0xf]
  %v95 = vld [vmem:[%s1 + $0x5c] sm:$0xf]
  %v96 = vld [vmem:[%s1 + $0x60] sm:$0xf]
  %v97 = vld [vmem:[%s1 + $0x64] sm:$0xf]
  %v98 = vld [vmem:[%s1 + $0x68] sm:$0xf]
  %v99 = vld [vmem:[%s1 + $0x6c] sm:$0xf]
  %v100 = vld [vmem:[%s1 + $0x70] sm:$0xf]
  %v101 = vld [vmem:[%s1 + $0x74] sm:$0xf]
  %v102 = vld [vmem:[%s1 + $0x78] sm:$0xf]
  %v103 = vld [vmem:[%s1 + $0x7c] sm:$0xf]
  %v120 = vunpack.c.l.b16 %v56
  %v121 = vunpack.c.h.b16 %v56
  %v122 = vunpack.c.l.b16 %v57
  %v123 = vunpack.c.h.b16 %v57
  %v124 = vunpack.c.l.b16 %v58
  %v125 = vunpack.c.h.b16 %v58
  %v126 = vunpack.c.l.b16 %v59
  %v127 = vunpack.c.h.b16 %v59
  %v128 = vunpack.c.l.b16 %v60
  %v129 = vunpack.c.h.b16 %v60
  %v130 = vunpack.c.l.b16 %v61
  %v131 = vunpack.c.h.b16 %v61
  %v132 = vunpack.c.l.b16 %v62
  %v133 = vunpack.c.h.b16 %v62
  %v134 = vunpack.c.l.b16 %v63
  %v135 = vunpack.c.h.b16 %v63
  %v136 = vunpack.c.l.b16 %v64
  %v137 = vunpack.c.h.b16 %v64
  %v138 = vunpack.c.l.b16 %v65
  %v139 = vunpack.c.h.b16 %v65
  %v140 = vunpack.c.l.b16 %v66
  %v141 = vunpack.c.h.b16 %v66
  %v142 = vunpack.c.l.b16 %v67
  %v143 = vunpack.c.h.b16 %v67
  %v144 = vunpack.c.l.b16 %v68
  %v145 = vunpack.c.h.b16 %v68
  %v146 = vunpack.c.l.b16 %v69
  %v147 = vunpack.c.h.b16 %v69
  %v148 = vunpack.c.l.b16 %v70
  %v149 = vunpack.c.h.b16 %v70
  %v150 = vunpack.c.l.b16 %v71
  %v151 = vunpack.c.h.b16 %v71
  %v152 = vpack.c.b16 %v122, %v120
  %v153 = vpack.c.b16 %v123, %v121
  %v154 = vpack.c.b16 %v126, %v124
  %v155 = vpack.c.b16 %v127, %v125
  %v156 = vpack.c.b16 %v130, %v128
  %v157 = vpack.c.b16 %v131, %v129
  %v158 = vpack.c.b16 %v134, %v132
  %v159 = vpack.c.b16 %v135, %v133
  %v160 = vpack.c.b16 %v138, %v136
  %v161 = vpack.c.b16 %v139, %v137
  %v162 = vpack.c.b16 %v142, %v140
  %v163 = vpack.c.b16 %v143, %v141
  %v164 = vpack.c.b16 %v146, %v144
  %v165 = vpack.c.b16 %v147, %v145
  %v166 = vpack.c.b16 %v150, %v148
  %v167 = vpack.c.b16 %v151, %v149
  %v216 = vunpack.c.l.b16 %v72
  %v217 = vunpack.c.l.b16 %v73
  %v218 = vunpack.c.l.b16 %v74
  %v219 = vunpack.c.l.b16 %v75
  %v220 = vunpack.c.l.b16 %v76
  %v221 = vunpack.c.l.b16 %v77
  %v222 = vunpack.c.l.b16 %v78
  %v223 = vunpack.c.l.b16 %v79
  %v224 = vunpack.c.l.b16 %v80
  %v225 = vunpack.c.l.b16 %v81
  %v226 = vunpack.c.l.b16 %v82
  %v227 = vunpack.c.l.b16 %v83
  %v228 = vunpack.c.l.b16 %v84
  %v229 = vunpack.c.l.b16 %v85
  %v230 = vunpack.c.l.b16 %v86
  %v231 = vunpack.c.l.b16 %v87
  %v232 = vunpack.c.l.b16 %v88
  %v233 = vunpack.c.l.b16 %v89
  %v234 = vunpack.c.l.b16 %v90
  %v235 = vunpack.c.l.b16 %v91
  %v236 = vunpack.c.l.b16 %v92
  %v237 = vunpack.c.l.b16 %v93
  %v238 = vunpack.c.l.b16 %v94
  %v239 = vunpack.c.l.b16 %v95
  %v240 = vunpack.c.l.b16 %v96
  %v241 = vunpack.c.l.b16 %v97
  %v242 = vunpack.c.l.b16 %v98
  %v243 = vunpack.c.l.b16 %v99
  %v244 = vunpack.c.l.b16 %v100
  %v245 = vunpack.c.l.b16 %v101
  %v246 = vunpack.c.l.b16 %v102
  %v247 = vunpack.c.l.b16 %v103
  %v248 = vpack.c.b16 %v217, %v216
  %v249 = vpack.c.b16 %v219, %v218
  %v250 = vpack.c.b16 %v221, %v220
  %v251 = vpack.c.b16 %v223, %v222
  %v252 = vpack.c.b16 %v225, %v224
  %v253 = vpack.c.b16 %v227, %v226
  %v254 = vpack.c.b16 %v229, %v228
  %v255 = vpack.c.b16 %v231, %v230
  %v256 = vpack.c.b16 %v233, %v232
  %v257 = vpack.c.b16 %v235, %v234
  %v258 = vpack.c.b16 %v237, %v236
  %v259 = vpack.c.b16 %v239, %v238
  %v260 = vpack.c.b16 %v241, %v240
  %v261 = vpack.c.b16 %v243, %v242
  %v262 = vpack.c.b16 %v245, %v244
  %v263 = vpack.c.b16 %v247, %v246
  %280 = vmatpush.bf16.msra.mxu0 %v255
  %281 = vmatpush.bf16.msra.mxu0 %v254
  %282 = vmatpush.bf16.msra.mxu0 %v253
  %283 = vmatpush.bf16.msra.mxu0 %v252
  %284 = vmatpush.bf16.msra.mxu0 %v251
  %285 = vmatpush.bf16.msra.mxu0 %v250
  %286 = vmatpush.bf16.msra.mxu0 %v249
  %287 = vmatpush.bf16.msra.mxu0 %v248
  %288 = vmatmul.bf16.gmra.mxu0 %v152
  %v289 = vpop.f32.mrf.mxu0
  %v290 = vadd.f32 0.0, %v289
  %v291 = vpop.f32.mrf.mxu0
  %v292 = vadd.f32 0.0, %v291
  %293 = vmatmul.bf16.gmra.mxu0 %v154
  %v294 = vpop.f32.mrf.mxu0
  %v295 = vadd.f32 0.0, %v294
  %v296 = vpop.f32.mrf.mxu0
  %v297 = vadd.f32 0.0, %v296
  %298 = vmatmul.bf16.gmra.mxu0 %v156
  %v299 = vpop.f32.mrf.mxu0
  %v300 = vadd.f32 0.0, %v299
  %v301 = vpop.f32.mrf.mxu0
  %v302 = vadd.f32 0.0, %v301
  %303 = vmatmul.bf16.gmra.mxu0 %v158
  %v304 = vpop.f32.mrf.mxu0
  %v305 = vadd.f32 0.0, %v304
  %v306 = vpop.f32.mrf.mxu0
  %v307 = vadd.f32 0.0, %v306
  %308 = vmatmul.bf16.gmra.mxu0 %v160
  %v309 = vpop.f32.mrf.mxu0
  %v310 = vadd.f32 0.0, %v309
  %v311 = vpop.f32.mrf.mxu0
  %v312 = vadd.f32 0.0, %v311
  %313 = vmatmul.bf16.gmra.mxu0 %v162
  %v314 = vpop.f32.mrf.mxu0
  %v315 = vadd.f32 0.0, %v314
  %v316 = vpop.f32.mrf.mxu0
  %v317 = vadd.f32 0.0, %v316
  %318 = vmatmul.bf16.gmra.mxu0 %v164
  %v319 = vpop.f32.mrf.mxu0
  %v320 = vadd.f32 0.0, %v319
  %v321 = vpop.f32.mrf.mxu0
  %v322 = vadd.f32 0.0, %v321
  %323 = vmatmul.bf16.gmra.mxu0 %v166
  %v324 = vpop.f32.mrf.mxu0
  %v325 = vadd.f32 0.0, %v324
  %v326 = vpop.f32.mrf.mxu0
  %v327 = vadd.f32 0.0, %v326
  %328 = vdwg.mxu0
  %329 = vmatpush.bf16.msra.mxu0 %v263
  %330 = vmatpush.bf16.msra.mxu0 %v262
  %331 = vmatpush.bf16.msra.mxu0 %v261
  %332 = vmatpush.bf16.msra.mxu0 %v260
  %333 = vmatpush.bf16.msra.mxu0 %v259
  %334 = vmatpush.bf16.msra.mxu0 %v258
  %335 = vmatpush.bf16.msra.mxu0 %v257
  %336 = vmatpush.bf16.msra.mxu0 %v256
  %337 = vmatmul.bf16.gmra.mxu0 %v153
  %v338 = vpop.f32.mrf.mxu0
  %v339 = vadd.f32 %v290, %v338
  %v340 = vpop.f32.mrf.mxu0
  %v341 = vadd.f32 %v292, %v340
  %342 = vmatmul.bf16.gmra.mxu0 %v155
  %v343 = vpop.f32.mrf.mxu0
  %v344 = vadd.f32 %v295, %v343
  %v345 = vpop.f32.mrf.mxu0
  %v346 = vadd.f32 %v297, %v345
  %347 = vmatmul.bf16.gmra.mxu0 %v157
  %v348 = vpop.f32.mrf.mxu0
  %v349 = vadd.f32 %v300, %v348
  %v350 = vpop.f32.mrf.mxu0
  %v351 = vadd.f32 %v302, %v350
  %352 = vmatmul.bf16.gmra.mxu0 %v159
  %v353 = vpop.f32.mrf.mxu0
  %v354 = vadd.f32 %v305, %v353
  %v355 = vpop.f32.mrf.mxu0
  %v356 = vadd.f32 %v307, %v355
  %357 = vmatmul.bf16.gmra.mxu0 %v161
  %v358 = vpop.f32.mrf.mxu0
  %v359 = vadd.f32 %v310, %v358
  %v360 = vpop.f32.mrf.mxu0
  %v361 = vadd.f32 %v312, %v360
  %362 = vmatmul.bf16.gmra.mxu0 %v163
  %v363 = vpop.f32.mrf.mxu0
  %v364 = vadd.f32 %v315, %v363
  %v365 = vpop.f32.mrf.mxu0
  %v366 = vadd.f32 %v317, %v365
  %367 = vmatmul.bf16.gmra.mxu0 %v165
  %v368 = vpop.f32.mrf.mxu0
  %v369 = vadd.f32 %v320, %v368
  %v370 = vpop.f32.mrf.mxu0
  %v371 = vadd.f32 %v322, %v370
  %372 = vmatmul.bf16.gmra.mxu0 %v167
  %v373 = vpop.f32.mrf.mxu0
  %v374 = vadd.f32 %v325, %v373
  %v375 = vpop.f32.mrf.mxu0
  %v376 = vadd.f32 %v327, %v375
  %377 = vdwg.mxu0
  %v378 = vadd.f32 %v40, %v339
  %v379 = vadd.f32 %v41, %v341
  %v380 = vadd.f32 %v42, %v344
  %v381 = vadd.f32 %v43, %v346
  %v382 = vadd.f32 %v44, %v349
  %v383 = vadd.f32 %v45, %v351
  %v384 = vadd.f32 %v46, %v354
  %v385 = vadd.f32 %v47, %v356
  %v386 = vadd.f32 %v48, %v359
  %v387 = vadd.f32 %v49, %v361
  %v388 = vadd.f32 %v50, %v364
  %v389 = vadd.f32 %v51, %v366
  %v390 = vadd.f32 %v52, %v369
  %v391 = vadd.f32 %v53, %v371
  %v392 = vadd.f32 %v54, %v374
  %v393 = vadd.f32 %v55, %v376
  %394 = vst [vmem:[#allocation2] sm:$0xff] %v378
  %395 = vst [vmem:[#allocation2 + $0x8] sm:$0xff] %v379
  %396 = vst [vmem:[#allocation2 + $0x10] sm:$0xff] %v380
  %397 = vst [vmem:[#allocation2 + $0x18] sm:$0xff] %v381
  %398 = vst [vmem:[#allocation2 + $0x20] sm:$0xff] %v382
  %399 = vst [vmem:[#allocation2 + $0x28] sm:$0xff] %v383
  %400 = vst [vmem:[#allocation2 + $0x30] sm:$0xff] %v384
  %401 = vst [vmem:[#allocation2 + $0x38] sm:$0xff] %v385
  %402 = vst [vmem:[#allocation2 + $0x40] sm:$0xff] %v386
  %403 = vst [vmem:[#allocation2 + $0x48] sm:$0xff] %v387
  %404 = vst [vmem:[#allocation2 + $0x50] sm:$0xff] %v388
  %405 = vst [vmem:[#allocation2 + $0x58] sm:$0xff] %v389
  %406 = vst [vmem:[#allocation2 + $0x60] sm:$0xff] %v390
  %407 = vst [vmem:[#allocation2 + $0x68] sm:$0xff] %v391
  %408 = vst [vmem:[#allocation2 + $0x70] sm:$0xff] %v392
  %409 = vst [vmem:[#allocation2 + $0x78] sm:$0xff] %v393
  // Predicated region
  $region26: #{my_network_forward.1} parent=0 // pred_check
    %p410 = pneg %p20
  $region27: #{my_network_forward.1} parent=0 // pred_check_branch
    %412 = sbr.rel (%p410) target = $region29
  $region28: #{my_network_forward.1} parent=0 // pred_region
    %v413 = vld [vmem:[#allocation2] sm:$0xff]
    %v414 = vld [vmem:[#allocation2 + $0x8] sm:$0xff]
    %v415 = vld [vmem:[#allocation2 + $0x10] sm:$0xff]
    %v416 = vld [vmem:[#allocation2 + $0x18] sm:$0xff]
    %v417 = vld [vmem:[#allocation2 + $0x20] sm:$0xff]
    %v418 = vld [vmem:[#allocation2 + $0x28] sm:$0xff]
    %v419 = vld [vmem:[#allocation2 + $0x30] sm:$0xff]
    %v420 = vld [vmem:[#allocation2 + $0x38] sm:$0xff]
    %v421 = vld [vmem:[#allocation2 + $0x40] sm:$0xff]
    %v422 = vld [vmem:[#allocation2 + $0x48] sm:$0xff]
    %v423 = vld [vmem:[#allocation2 + $0x50] sm:$0xff]
    %v424 = vld [vmem:[#allocation2 + $0x58] sm:$0xff]
    %v425 = vld [vmem:[#allocation2 + $0x60] sm:$0xff]
    %v426 = vld [vmem:[#allocation2 + $0x68] sm:$0xff]
    %v427 = vld [vmem:[#allocation2 + $0x70] sm:$0xff]
    %v428 = vld [vmem:[#allocation2 + $0x78] sm:$0xff]
    %v429 = vld [vmem:[%s2] sm:$0x1]
    %v431 = vperm.slane %v429, 0
    %v433 = vadd.f32 %v413, %v431
    %v434 = vadd.f32 %v414, %v431
    %v435 = vadd.f32 %v415, %v431
    %v436 = vadd.f32 %v416, %v431
    %v437 = vadd.f32 %v417, %v431
    %v438 = vadd.f32 %v418, %v431
    %v439 = vadd.f32 %v419, %v431
    %v440 = vadd.f32 %v420, %v431
    %v441 = vadd.f32 %v421, %v431
    %v442 = vadd.f32 %v422, %v431
    %v443 = vadd.f32 %v423, %v431
    %v444 = vadd.f32 %v424, %v431
    %v445 = vadd.f32 %v425, %v431
    %v446 = vadd.f32 %v426, %v431
    %v447 = vadd.f32 %v427, %v431
    %v448 = vadd.f32 %v428, %v431
    %v449 = vmax.f32 %v433, 0.0
    %v450 = vmax.f32 %v434, 0.0
    %v451 = vmax.f32 %v435, 0.0
    %v452 = vmax.f32 %v436, 0.0
    %v453 = vmax.f32 %v437, 0.0
    %v454 = vmax.f32 %v438, 0.0
    %v455 = vmax.f32 %v439, 0.0
    %v456 = vmax.f32 %v440, 0.0
    %v457 = vmax.f32 %v441, 0.0
    %v458 = vmax.f32 %v442, 0.0
    %v459 = vmax.f32 %v443, 0.0
    %v460 = vmax.f32 %v444, 0.0
    %v461 = vmax.f32 %v445, 0.0
    %v462 = vmax.f32 %v446, 0.0
    %v463 = vmax.f32 %v447, 0.0
    %v464 = vmax.f32 %v448, 0.0
    %v465 = vpack.c.bf16 %v450, %v449
    %v466 = vpack.c.bf16 %v452, %v451
    %v467 = vpack.c.bf16 %v454, %v453
    %v468 = vpack.c.bf16 %v456, %v455
    %v469 = vpack.c.bf16 %v458, %v457
    %v470 = vpack.c.bf16 %v460, %v459
    %v471 = vpack.c.bf16 %v462, %v461
    %v472 = vpack.c.bf16 %v464, %v463
    %v473 = vld [vmem:[%s3] sm:$0xf]
    %v474 = vld [vmem:[%s3 + $0x4] sm:$0xf]
    %v475 = vld [vmem:[%s3 + $0x8] sm:$0xf]
    %v476 = vld [vmem:[%s3 + $0xc] sm:$0xf]
    %v477 = vld [vmem:[%s3 + $0x10] sm:$0xf]
    %v478 = vld [vmem:[%s3 + $0x14] sm:$0xf]
    %v479 = vld [vmem:[%s3 + $0x18] sm:$0xf]
    %v480 = vld [vmem:[%s3 + $0x1c] sm:$0xf]
    %v481 = vld [vmem:[%s3 + $0x20] sm:$0xf]
    %v482 = vld [vmem:[%s3 + $0x24] sm:$0xf]
    %v483 = vld [vmem:[%s3 + $0x28] sm:$0xf]
    %v484 = vld [vmem:[%s3 + $0x2c] sm:$0xf]
    %v485 = vld [vmem:[%s3 + $0x30] sm:$0xf]
    %v486 = vld [vmem:[%s3 + $0x34] sm:$0xf]
    %v487 = vld [vmem:[%s3 + $0x38] sm:$0xf]
    %v488 = vld [vmem:[%s3 + $0x3c] sm:$0xf]
    %v489 = vld [vmem:[%s4] sm:$0x1]
    %v491 = vperm.slane %v489, 0
    %v509 = vunpack.c.l.b16 %v473
    %v510 = vunpack.c.l.b16 %v474
    %v511 = vunpack.c.l.b16 %v475
    %v512 = vunpack.c.l.b16 %v476
    %v513 = vunpack.c.l.b16 %v477
    %v514 = vunpack.c.l.b16 %v478
    %v515 = vunpack.c.l.b16 %v479
    %v516 = vunpack.c.l.b16 %v480
    %v517 = vunpack.c.l.b16 %v481
    %v518 = vunpack.c.l.b16 %v482
    %v519 = vunpack.c.l.b16 %v483
    %v520 = vunpack.c.l.b16 %v484
    %v521 = vunpack.c.l.b16 %v485
    %v522 = vunpack.c.l.b16 %v486
    %v523 = vunpack.c.l.b16 %v487
    %v524 = vunpack.c.l.b16 %v488
    %v525 = vpack.c.b16 %v510, %v509
    %v526 = vpack.c.b16 %v512, %v511
    %v527 = vpack.c.b16 %v514, %v513
    %v528 = vpack.c.b16 %v516, %v515
    %v529 = vpack.c.b16 %v518, %v517
    %v530 = vpack.c.b16 %v520, %v519
    %v531 = vpack.c.b16 %v522, %v521
    %v532 = vpack.c.b16 %v524, %v523
    %541 = vmatpush.bf16.msra.mxu0 %v532
    %542 = vmatpush.bf16.msra.mxu0 %v531
    %543 = vmatpush.bf16.msra.mxu0 %v530
    %544 = vmatpush.bf16.msra.mxu0 %v529
    %545 = vmatpush.bf16.msra.mxu0 %v528
    %546 = vmatpush.bf16.msra.mxu0 %v527
    %547 = vmatpush.bf16.msra.mxu0 %v526
    %548 = vmatpush.bf16.msra.mxu0 %v525
    %549 = vmatmul.bf16.gmra.mxu0 %v465
    %v550 = vpop.f32.mrf.mxu0
    %v551 = vadd.f32 %v491, %v550
    %v552 = vpop.f32.mrf.mxu0
    %v553 = vadd.f32 %v491, %v552
    %554 = vmatmul.bf16.gmra.mxu0 %v466
    %v555 = vpop.f32.mrf.mxu0
    %v556 = vadd.f32 %v491, %v555
    %v557 = vpop.f32.mrf.mxu0
    %v558 = vadd.f32 %v491, %v557
    %559 = vmatmul.bf16.gmra.mxu0 %v467
    %v560 = vpop.f32.mrf.mxu0
    %v561 = vadd.f32 %v491, %v560
    %v562 = vpop.f32.mrf.mxu0
    %v563 = vadd.f32 %v491, %v562
    %564 = vmatmul.bf16.gmra.mxu0 %v468
    %v565 = vpop.f32.mrf.mxu0
    %v566 = vadd.f32 %v491, %v565
    %v567 = vpop.f32.mrf.mxu0
    %v568 = vadd.f32 %v491, %v567
    %569 = vmatmul.bf16.gmra.mxu0 %v469
    %v570 = vpop.f32.mrf.mxu0
    %v571 = vadd.f32 %v491, %v570
    %v572 = vpop.f32.mrf.mxu0
    %v573 = vadd.f32 %v491, %v572
    %574 = vmatmul.bf16.gmra.mxu0 %v470
    %v575 = vpop.f32.mrf.mxu0
    %v576 = vadd.f32 %v491, %v575
    %v577 = vpop.f32.mrf.mxu0
    %v578 = vadd.f32 %v491, %v577
    %579 = vmatmul.bf16.gmra.mxu0 %v471
    %v580 = vpop.f32.mrf.mxu0
    %v581 = vadd.f32 %v491, %v580
    %v582 = vpop.f32.mrf.mxu0
    %v583 = vadd.f32 %v491, %v582
    %584 = vmatmul.bf16.gmra.mxu0 %v472
    %v585 = vpop.f32.mrf.mxu0
    %v586 = vadd.f32 %v491, %v585
    %v587 = vpop.f32.mrf.mxu0
    %v588 = vadd.f32 %v491, %v587
    %589 = vdwg.mxu0
    %v590 = vxor.u32 %v551, 2147483648
    %v591 = vxor.u32 %v553, 2147483648
    %v592 = vxor.u32 %v556, 2147483648
    %v593 = vxor.u32 %v558, 2147483648
    %v594 = vxor.u32 %v561, 2147483648
    %v595 = vxor.u32 %v563, 2147483648
    %v596 = vxor.u32 %v566, 2147483648
    %v597 = vxor.u32 %v568, 2147483648
    %v598 = vxor.u32 %v571, 2147483648
    %v599 = vxor.u32 %v573, 2147483648
    %v600 = vxor.u32 %v576, 2147483648
    %v601 = vxor.u32 %v578, 2147483648
    %v602 = vxor.u32 %v581, 2147483648
    %v603 = vxor.u32 %v583, 2147483648
    %v604 = vxor.u32 %v586, 2147483648
    %v605 = vxor.u32 %v588, 2147483648
    %v606 = vmul.f32 %v590, 1.442695
    %v607 = vpow.pop %v606
    %v608 = vmul.f32 %v591, 1.442695
    %v609 = vpow.pop %v608
    %v610 = vmul.f32 %v592, 1.442695
    %v611 = vpow.pop %v610
    %v612 = vmul.f32 %v593, 1.442695
    %v613 = vpow.pop %v612
    %v614 = vmul.f32 %v594, 1.442695
    %v615 = vpow.pop %v614
    %v616 = vmul.f32 %v595, 1.442695
    %v617 = vpow.pop %v616
    %v618 = vmul.f32 %v596, 1.442695
    %v619 = vpow.pop %v618
    %v620 = vmul.f32 %v597, 1.442695
    %v621 = vpow.pop %v620
    %v622 = vmul.f32 %v598, 1.442695
    %v623 = vpow.pop %v622
    %v624 = vmul.f32 %v599, 1.442695
    %v625 = vpow.pop %v624
    %v626 = vmul.f32 %v600, 1.442695
    %v627 = vpow.pop %v626
    %v628 = vmul.f32 %v601, 1.442695
    %v629 = vpow.pop %v628
    %v630 = vmul.f32 %v602, 1.442695
    %v631 = vpow.pop %v630
    %v632 = vmul.f32 %v603, 1.442695
    %v633 = vpow.pop %v632
    %v634 = vmul.f32 %v604, 1.442695
    %v635 = vpow.pop %v634
    %v636 = vmul.f32 %v605, 1.442695
    %v637 = vpow.pop %v636
    %v638 = vadd.f32 %v607, 1.0
    %v639 = vadd.f32 %v609, 1.0
    %v640 = vadd.f32 %v611, 1.0
    %v641 = vadd.f32 %v613, 1.0
    %v642 = vadd.f32 %v615, 1.0
    %v643 = vadd.f32 %v617, 1.0
    %v644 = vadd.f32 %v619, 1.0
    %v645 = vadd.f32 %v621, 1.0
    %v646 = vadd.f32 %v623, 1.0
    %v647 = vadd.f32 %v625, 1.0
    %v648 = vadd.f32 %v627, 1.0
    %v649 = vadd.f32 %v629, 1.0
    %v650 = vadd.f32 %v631, 1.0
    %v651 = vadd.f32 %v633, 1.0
    %v652 = vadd.f32 %v635, 1.0
    %v653 = vadd.f32 %v637, 1.0
    %v654 = vrcp.pop %v638
    %v655 = vmul.f32 %v638, %v654
    %v656 = vsub.f32 1.0, %v655
    %v657 = vmul.f32 %v654, %v656
    %v658 = vadd.f32 %v654, %v657
    %vm659 = vweird.f32 %v638
    %vm660 = vweird.f32 %v654
    %vm661 = vmor %vm659, %vm660
    %v662 = vsel %vm661, %v654, %v658
    %v663 = vand.u32 2147483647, %v638
    %vm664 = vcmp.eq.f32.partialorder %v663, 8.507059e+37
    %v665 = vand.u32 %v638, 2147483648
    %v666 = vor.u32 1.1754944e-38, %v665
    %v667 = vsel %vm664, %v666, %v662
    %v668 = vmul.f32 1.0, %v667
    %v669 = vrcp.pop %v639
    %v670 = vmul.f32 %v639, %v669
    %v671 = vsub.f32 1.0, %v670
    %v672 = vmul.f32 %v669, %v671
    %v673 = vadd.f32 %v669, %v672
    %vm674 = vweird.f32 %v639
    %vm675 = vweird.f32 %v669
    %vm676 = vmor %vm674, %vm675
    %v677 = vsel %vm676, %v669, %v673
    %v678 = vand.u32 2147483647, %v639
    %vm679 = vcmp.eq.f32.partialorder %v678, 8.507059e+37
    %v680 = vand.u32 %v639, 2147483648
    %v681 = vor.u32 1.1754944e-38, %v680
    %v682 = vsel %vm679, %v681, %v677
    %v683 = vmul.f32 1.0, %v682
    %v684 = vrcp.pop %v640
    %v685 = vmul.f32 %v640, %v684
    %v686 = vsub.f32 1.0, %v685
    %v687 = vmul.f32 %v684, %v686
    %v688 = vadd.f32 %v684, %v687
    %vm689 = vweird.f32 %v640
    %vm690 = vweird.f32 %v684
    %vm691 = vmor %vm689, %vm690
    %v692 = vsel %vm691, %v684, %v688
    %v693 = vand.u32 2147483647, %v640
    %vm694 = vcmp.eq.f32.partialorder %v693, 8.507059e+37
    %v695 = vand.u32 %v640, 2147483648
    %v696 = vor.u32 1.1754944e-38, %v695
    %v697 = vsel %vm694, %v696, %v692
    %v698 = vmul.f32 1.0, %v697
    %v699 = vrcp.pop %v641
    %v700 = vmul.f32 %v641, %v699
    %v701 = vsub.f32 1.0, %v700
    %v702 = vmul.f32 %v699, %v701
    %v703 = vadd.f32 %v699, %v702
    %vm704 = vweird.f32 %v641
    %vm705 = vweird.f32 %v699
    %vm706 = vmor %vm704, %vm705
    %v707 = vsel %vm706, %v699, %v703
    %v708 = vand.u32 2147483647, %v641
    %vm709 = vcmp.eq.f32.partialorder %v708, 8.507059e+37
    %v710 = vand.u32 %v641, 2147483648
    %v711 = vor.u32 1.1754944e-38, %v710
    %v712 = vsel %vm709, %v711, %v707
    %v713 = vmul.f32 1.0, %v712
    %v714 = vrcp.pop %v642
    %v715 = vmul.f32 %v642, %v714
    %v716 = vsub.f32 1.0, %v715
    %v717 = vmul.f32 %v714, %v716
    %v718 = vadd.f32 %v714, %v717
    %vm719 = vweird.f32 %v642
    %vm720 = vweird.f32 %v714
    %vm721 = vmor %vm719, %vm720
    %v722 = vsel %vm721, %v714, %v718
    %v723 = vand.u32 2147483647, %v642
    %vm724 = vcmp.eq.f32.partialorder %v723, 8.507059e+37
    %v725 = vand.u32 %v642, 2147483648
    %v726 = vor.u32 1.1754944e-38, %v725
    %v727 = vsel %vm724, %v726, %v722
    %v728 = vmul.f32 1.0, %v727
    %v729 = vrcp.pop %v643
    %v730 = vmul.f32 %v643, %v729
    %v731 = vsub.f32 1.0, %v730
    %v732 = vmul.f32 %v729, %v731
    %v733 = vadd.f32 %v729, %v732
    %vm734 = vweird.f32 %v643
    %vm735 = vweird.f32 %v729
    %vm736 = vmor %vm734, %vm735
    %v737 = vsel %vm736, %v729, %v733
    %v738 = vand.u32 2147483647, %v643
    %vm739 = vcmp.eq.f32.partialorder %v738, 8.507059e+37
    %v740 = vand.u32 %v643, 2147483648
    %v741 = vor.u32 1.1754944e-38, %v740
    %v742 = vsel %vm739, %v741, %v737
    %v743 = vmul.f32 1.0, %v742
    %v744 = vrcp.pop %v644
    %v745 = vmul.f32 %v644, %v744
    %v746 = vsub.f32 1.0, %v745
    %v747 = vmul.f32 %v744, %v746
    %v748 = vadd.f32 %v744, %v747
    %vm749 = vweird.f32 %v644
    %vm750 = vweird.f32 %v744
    %vm751 = vmor %vm749, %vm750
    %v752 = vsel %vm751, %v744, %v748
    %v753 = vand.u32 2147483647, %v644
    %vm754 = vcmp.eq.f32.partialorder %v753, 8.507059e+37
    %v755 = vand.u32 %v644, 2147483648
    %v756 = vor.u32 1.1754944e-38, %v755
    %v757 = vsel %vm754, %v756, %v752
    %v758 = vmul.f32 1.0, %v757
    %v759 = vrcp.pop %v645
    %v760 = vmul.f32 %v645, %v759
    %v761 = vsub.f32 1.0, %v760
    %v762 = vmul.f32 %v759, %v761
    %v763 = vadd.f32 %v759, %v762
    %vm764 = vweird.f32 %v645
    %vm765 = vweird.f32 %v759
    %vm766 = vmor %vm764, %vm765
    %v767 = vsel %vm766, %v759, %v763
    %v768 = vand.u32 2147483647, %v645
    %vm769 = vcmp.eq.f32.partialorder %v768, 8.507059e+37
    %v770 = vand.u32 %v645, 2147483648
    %v771 = vor.u32 1.1754944e-38, %v770
    %v772 = vsel %vm769, %v771, %v767
    %v773 = vmul.f32 1.0, %v772
    %v774 = vrcp.pop %v646
    %v775 = vmul.f32 %v646, %v774
    %v776 = vsub.f32 1.0, %v775
    %v777 = vmul.f32 %v774, %v776
    %v778 = vadd.f32 %v774, %v777
    %vm779 = vweird.f32 %v646
    %vm780 = vweird.f32 %v774
    %vm781 = vmor %vm779, %vm780
    %v782 = vsel %vm781, %v774, %v778
    %v783 = vand.u32 2147483647, %v646
    %vm784 = vcmp.eq.f32.partialorder %v783, 8.507059e+37
    %v785 = vand.u32 %v646, 2147483648
    %v786 = vor.u32 1.1754944e-38, %v785
    %v787 = vsel %vm784, %v786, %v782
    %v788 = vmul.f32 1.0, %v787
    %v789 = vrcp.pop %v647
    %v790 = vmul.f32 %v647, %v789
    %v791 = vsub.f32 1.0, %v790
    %v792 = vmul.f32 %v789, %v791
    %v793 = vadd.f32 %v789, %v792
    %vm794 = vweird.f32 %v647
    %vm795 = vweird.f32 %v789
    %vm796 = vmor %vm794, %vm795
    %v797 = vsel %vm796, %v789, %v793
    %v798 = vand.u32 2147483647, %v647
    %vm799 = vcmp.eq.f32.partialorder %v798, 8.507059e+37
    %v800 = vand.u32 %v647, 2147483648
    %v801 = vor.u32 1.1754944e-38, %v800
    %v802 = vsel %vm799, %v801, %v797
    %v803 = vmul.f32 1.0, %v802
    %v804 = vrcp.pop %v648
    %v805 = vmul.f32 %v648, %v804
    %v806 = vsub.f32 1.0, %v805
    %v807 = vmul.f32 %v804, %v806
    %v808 = vadd.f32 %v804, %v807
    %vm809 = vweird.f32 %v648
    %vm810 = vweird.f32 %v804
    %vm811 = vmor %vm809, %vm810
    %v812 = vsel %vm811, %v804, %v808
    %v813 = vand.u32 2147483647, %v648
    %vm814 = vcmp.eq.f32.partialorder %v813, 8.507059e+37
    %v815 = vand.u32 %v648, 2147483648
    %v816 = vor.u32 1.1754944e-38, %v815
    %v817 = vsel %vm814, %v816, %v812
    %v818 = vmul.f32 1.0, %v817
    %v819 = vrcp.pop %v649
    %v820 = vmul.f32 %v649, %v819
    %v821 = vsub.f32 1.0, %v820
    %v822 = vmul.f32 %v819, %v821
    %v823 = vadd.f32 %v819, %v822
    %vm824 = vweird.f32 %v649
    %vm825 = vweird.f32 %v819
    %vm826 = vmor %vm824, %vm825
    %v827 = vsel %vm826, %v819, %v823
    %v828 = vand.u32 2147483647, %v649
    %vm829 = vcmp.eq.f32.partialorder %v828, 8.507059e+37
    %v830 = vand.u32 %v649, 2147483648
    %v831 = vor.u32 1.1754944e-38, %v830
    %v832 = vsel %vm829, %v831, %v827
    %v833 = vmul.f32 1.0, %v832
    %v834 = vrcp.pop %v650
    %v835 = vmul.f32 %v650, %v834
    %v836 = vsub.f32 1.0, %v835
    %v837 = vmul.f32 %v834, %v836
    %v838 = vadd.f32 %v834, %v837
    %vm839 = vweird.f32 %v650
    %vm840 = vweird.f32 %v834
    %vm841 = vmor %vm839, %vm840
    %v842 = vsel %vm841, %v834, %v838
    %v843 = vand.u32 2147483647, %v650
    %vm844 = vcmp.eq.f32.partialorder %v843, 8.507059e+37
    %v845 = vand.u32 %v650, 2147483648
    %v846 = vor.u32 1.1754944e-38, %v845
    %v847 = vsel %vm844, %v846, %v842
    %v848 = vmul.f32 1.0, %v847
    %v849 = vrcp.pop %v651
    %v850 = vmul.f32 %v651, %v849
    %v851 = vsub.f32 1.0, %v850
    %v852 = vmul.f32 %v849, %v851
    %v853 = vadd.f32 %v849, %v852
    %vm854 = vweird.f32 %v651
    %vm855 = vweird.f32 %v849
    %vm856 = vmor %vm854, %vm855
    %v857 = vsel %vm856, %v849, %v853
    %v858 = vand.u32 2147483647, %v651
    %vm859 = vcmp.eq.f32.partialorder %v858, 8.507059e+37
    %v860 = vand.u32 %v651, 2147483648
    %v861 = vor.u32 1.1754944e-38, %v860
    %v862 = vsel %vm859, %v861, %v857
    %v863 = vmul.f32 1.0, %v862
    %v864 = vrcp.pop %v652
    %v865 = vmul.f32 %v652, %v864
    %v866 = vsub.f32 1.0, %v865
    %v867 = vmul.f32 %v864, %v866
    %v868 = vadd.f32 %v864, %v867
    %vm869 = vweird.f32 %v652
    %vm870 = vweird.f32 %v864
    %vm871 = vmor %vm869, %vm870
    %v872 = vsel %vm871, %v864, %v868
    %v873 = vand.u32 2147483647, %v652
    %vm874 = vcmp.eq.f32.partialorder %v873, 8.507059e+37
    %v875 = vand.u32 %v652, 2147483648
    %v876 = vor.u32 1.1754944e-38, %v875
    %v877 = vsel %vm874, %v876, %v872
    %v878 = vmul.f32 1.0, %v877
    %v879 = vrcp.pop %v653
    %v880 = vmul.f32 %v653, %v879
    %v881 = vsub.f32 1.0, %v880
    %v882 = vmul.f32 %v879, %v881
    %v883 = vadd.f32 %v879, %v882
    %vm884 = vweird.f32 %v653
    %vm885 = vweird.f32 %v879
    %vm886 = vmor %vm884, %vm885
    %v887 = vsel %vm886, %v879, %v883
    %v888 = vand.u32 2147483647, %v653
    %vm889 = vcmp.eq.f32.partialorder %v888, 8.507059e+37
    %v890 = vand.u32 %v653, 2147483648
    %v891 = vor.u32 1.1754944e-38, %v890
    %v892 = vsel %vm889, %v891, %v887
    %v893 = vmul.f32 1.0, %v892
    %894 = vst [vmem:[%s5] sm:$0xff] %v668
    %895 = vst [vmem:[%s5 + $0x8] sm:$0xff] %v683
    %896 = vst [vmem:[%s5 + $0x10] sm:$0xff] %v698
    %897 = vst [vmem:[%s5 + $0x18] sm:$0xff] %v713
    %898 = vst [vmem:[%s5 + $0x20] sm:$0xff] %v728
    %899 = vst [vmem:[%s5 + $0x28] sm:$0xff] %v743
    %900 = vst [vmem:[%s5 + $0x30] sm:$0xff] %v758
    %901 = vst [vmem:[%s5 + $0x38] sm:$0xff] %v773
    %902 = vst [vmem:[%s5 + $0x40] sm:$0xff] %v788
    %903 = vst [vmem:[%s5 + $0x48] sm:$0xff] %v803
    %904 = vst [vmem:[%s5 + $0x50] sm:$0xff] %v818
    %905 = vst [vmem:[%s5 + $0x58] sm:$0xff] %v833
    %906 = vst [vmem:[%s5 + $0x60] sm:$0xff] %v848
    %907 = vst [vmem:[%s5 + $0x68] sm:$0xff] %v863
    %908 = vst [vmem:[%s5 + $0x70] sm:$0xff] %v878
    %909 = vst [vmem:[%s5 + $0x78] sm:$0xff] %v893
  $region29: #{my_network_forward.1} parent=0 // pred_fallthru
    _
  // Predicated region
  $region30: #{my_network_forward.1} parent=0 // pred_check
    _
  $region31: #{my_network_forward.1} parent=0 // pred_check_branch
    %911 = sbr.rel (0) target = $region33
  $region32: #{my_network_forward.1} parent=0 // pred_region
    _
  $region33: #{my_network_forward.1} parent=0 // pred_fallthru
    _
  // Predicated region
  $region34: #{my_network_forward.1} parent=0 // pred_check
    _
  $region35: #{my_network_forward.1} parent=0 // pred_check_branch
    %913 = sbr.rel (0) target = $region37
  $region36: #{my_network_forward.1} parent=0 // pred_region
    _
  $region37: #{my_network_forward.1} parent=0 // pred_fallthru
    _

</llo_original>
